<compile_context>
chip_gen: v7x
topology: tpu7x:2x2x1
jax: 0.10.0
libtpu: 0.0.40
codegen_flags: <defaults>
</compile_context>

<pallas_src>
import jax
import jax.numpy as jnp
from jax.experimental import pallas as pl
from jax.experimental.pallas import tpu as pltpu


def _readout_kernel(nodes_ref, edges_ref, w1i_ref, w1e_ref, w1j_ref, b1_ref,
                    w2_ref, b2_ref, w3_ref, b3_ref, out_ref):
    # nodes_ref: (TB, N, D)      edges_ref: (TB, N*N, E)
    # w1i/w1j:   (D, H)          w1e: (E, H)     b1/b2/w3: (1, H)   b3: (1, 1)
    # w2:        (H, H)          out_ref: (TB, N, N)
    tb, n, d = nodes_ref.shape
    nn = edges_ref.shape[1]
    h = w2_ref.shape[0]
    f32 = jnp.float32

    nodes = nodes_ref[...].reshape(tb * n, d)
    edges = edges_ref[...].reshape(tb * nn, edges_ref.shape[2])

    # Layer 1, decomposed: concat @ W1 == state_i@W1_i + edges@W1_e + state_j@W1_j
    proj_i = jnp.dot(nodes, w1i_ref[...], preferred_element_type=f32) + b1_ref[...]
    proj_j = jnp.dot(nodes, w1j_ref[...], preferred_element_type=f32)
    proj_e = jnp.dot(edges, w1e_ref[...], preferred_element_type=f32)

    # Pair (i, k) grid: row i*N+k gets proj_i[i] + proj_j[k] + proj_e[i*N+k]
    h1 = (proj_e.reshape(tb, n, n, h)
          + proj_i.reshape(tb, n, 1, h)
          + proj_j.reshape(tb, 1, n, h))
    h1 = jnp.maximum(h1, 0.0).reshape(tb * nn, h)

    # Layer 2
    h2 = jnp.dot(h1.astype(w2_ref.dtype), w2_ref[...], preferred_element_type=f32)
    h2 = jnp.maximum(h2 + b2_ref[...], 0.0)

    # Output layer (H -> 1) as a lane reduction; write a dense (TB, N, N) slab.
    out = jnp.sum(h2.reshape(tb, n, n, h) * w3_ref[...], axis=-1) + b3_ref[...]
    out_ref[...] = out.astype(out_ref.dtype)


def _pick_tb(batch, n, d, e, h, dtype_bytes=4, max_tb=8):
    """Batches per grid step: amortize per-step pipeline overhead while keeping
    double-buffered tiles + f32 intermediates well under scoped VMEM
    (budgeted for v7x's 64 MiB physical / 32 MiB scoped default)."""
    nn = n * n
    per_batch = (2 * (n * d + nn * e + nn) * dtype_bytes   # double-buffered in/out tiles
                 + 4 * nn * h * 4)                         # f32 intermediates
    budget = 8 * 1024 * 1024
    tb = max(1, min(max_tb, budget // max(per_batch, 1), batch))
    if batch >= 2:
        tb = min(tb, max(1, batch // 2))  # keep >= 2 grid steps (v7x has 2 TCs)
    while batch % tb:                      # avoid ragged last block
        tb -= 1
    return int(tb)


def readout_forward(nodes, edges, params, *, tb=None):
    """Mirror of Readout.forward.

    nodes:  (B, N, D)           edges: (B, N*N, E)
    params: (w1, b1, w2, b2, w3, b3) in y = x @ W + b convention,
            w1: (2D+E, H), b1: (H,), w2: (H, H), b2: (H,), w3: (H, 1), b3: (1,)
    returns (B, N*N, 1)
    """
    w1, b1, w2, b2, w3, b3 = params
    B, N, D = nodes.shape
    NN = N * N
    assert edges.shape[0] == B and edges.shape[1] == NN
    E = edges.shape[2]
    H = w2.shape[0]
    assert w1.shape == (2 * D + E, H)

    # Split W1 by concat segment [state_i | edges | state_j].
    w1_i = w1[:D]
    w1_e = w1[D:D + E]
    w1_j = w1[D + E:]
    b1_r = b1.reshape(1, H).astype(jnp.float32)
    b2_r = b2.reshape(1, H).astype(jnp.float32)
    w3_r = w3.reshape(1, H).astype(jnp.float32)
    b3_r = b3.reshape(1, 1).astype(jnp.float32)

    if tb is None:
        tb = _pick_tb(B, N, D, E, H, dtype_bytes=nodes.dtype.itemsize)
    assert B % tb == 0
    grid = B // tb

    flops = 2 * B * (2 * N * D * H + NN * E * H + NN * H * H + NN * H)
    param_bytes = 4 * ((2 * D + E) * H + H + H * H + H + H + 1)
    bytes_accessed = (nodes.size * nodes.dtype.itemsize
                      + edges.size * edges.dtype.itemsize
                      + B * NN * nodes.dtype.itemsize
                      + param_bytes)

    out = pl.pallas_call(
        _readout_kernel,
        out_shape=jax.ShapeDtypeStruct((B, N, N), nodes.dtype),
        grid_spec=pltpu.PrefetchScalarGridSpec(
            num_scalar_prefetch=0,
            grid=(grid,),
            in_specs=[
                pl.BlockSpec((tb, N, D), lambda b: (b, 0, 0)),   # nodes
                pl.BlockSpec((tb, NN, E), lambda b: (b, 0, 0)),  # edges
                pl.BlockSpec((D, H), lambda b: (0, 0)),          # w1_i (resident)
                pl.BlockSpec((E, H), lambda b: (0, 0)),          # w1_e
                pl.BlockSpec((D, H), lambda b: (0, 0)),          # w1_j
                pl.BlockSpec((1, H), lambda b: (0, 0)),          # b1
                pl.BlockSpec((H, H), lambda b: (0, 0)),          # w2
                pl.BlockSpec((1, H), lambda b: (0, 0)),          # b2
                pl.BlockSpec((1, H), lambda b: (0, 0)),          # w3 (row form)
                pl.BlockSpec((1, 1), lambda b: (0, 0)),          # b3
            ],
            out_specs=pl.BlockSpec((tb, N, N), lambda b: (b, 0, 0)),
        ),
        compiler_params=pltpu.CompilerParams(
            dimension_semantics=("parallel",),
            vmem_limit_bytes=32 * 1024 * 1024,
        ),
        cost_estimate=pl.CostEstimate(
            flops=flops, transcendentals=0, bytes_accessed=bytes_accessed),
    )(nodes, edges, w1_i, w1_e, w1_j, b1_r, w2, b2_r, w3_r, b3_r)

    # (B, N, N) lane-dense slab -> (B, N*N, 1) to match the PyTorch module.
    return out.reshape(B, NN, 1)


def _reference(nodes, edges, params):
    """Plain-JAX mirror of the PyTorch forward (for verification)."""
    w1, b1, w2, b2, w3, b3 = params
    B, N, D = nodes.shape
    state_i = jnp.repeat(nodes, N, axis=1)   # == nodes.repeat(1,1,N).view(-1,N*N,D)
    state_j = jnp.tile(nodes, (1, N, 1))     # == nodes.repeat(1,N,1)
    concat = jnp.concatenate([state_i, edges, state_j], axis=-1)
    a1 = jnp.maximum(concat @ w1 + b1, 0.0)
    a2 = jnp.maximum(a1 @ w2 + b2, 0.0)
    return a2 @ w3 + b3


if __name__ == "__main__":
    key = jax.random.PRNGKey(0)
    ks = jax.random.split(key, 8)

    B, N = 2, 8                      # batch, num_nodes
    state_dim = 16                   # D
    nb_features_edge = 4             # E
    intermediate_dim = 32            # H
    din = 2 * state_dim + nb_features_edge

    nodes = jax.random.normal(ks[0], (B, N, state_dim), dtype=jnp.float32)
    edges = jax.random.normal(ks[1], (B, N * N, nb_features_edge), dtype=jnp.float32)

    w1 = jax.random.normal(ks[2], (din, intermediate_dim), jnp.float32) / jnp.sqrt(din)
    b1 = 0.1 * jax.random.normal(ks[3], (intermediate_dim,), jnp.float32)
    w2 = jax.random.normal(ks[4], (intermediate_dim, intermediate_dim),
                           jnp.float32) / jnp.sqrt(intermediate_dim)
    b2 = 0.1 * jax.random.normal(ks[5], (intermediate_dim,), jnp.float32)
    w3 = jax.random.normal(ks[6], (intermediate_dim, 1),
                           jnp.float32) / jnp.sqrt(intermediate_dim)
    b3 = 0.1 * jax.random.normal(ks[7], (1,), jnp.float32)
    params = (w1, b1, w2, b2, w3, b3)

    out = readout_forward(nodes, edges, params)
    out = jax.block_until_ready(out)

    ref = _reference(nodes, edges, params)
    assert out.shape == (B, N * N, 1)
    assert jnp.allclose(out, ref, atol=1e-3, rtol=1e-3), (
        float(jnp.max(jnp.abs(out - ref))))

    print("KERNEL_OK")
</pallas_src>

<mosaic_0001>
module attributes {stable_mosaic.version = 11 : i64} {
  func.func @_readout_kernel(%arg0: i32, %arg1: memref<1x8x16xf32, #tpu.memory_space<vmem>>, %arg2: memref<1x64x4xf32, #tpu.memory_space<vmem>>, %arg3: memref<16x32xf32, #tpu.memory_space<vmem>>, %arg4: memref<4x32xf32, #tpu.memory_space<vmem>>, %arg5: memref<16x32xf32, #tpu.memory_space<vmem>>, %arg6: memref<1x32xf32, #tpu.memory_space<vmem>>, %arg7: memref<32x32xf32, #tpu.memory_space<vmem>>, %arg8: memref<1x32xf32, #tpu.memory_space<vmem>>, %arg9: memref<1x32xf32, #tpu.memory_space<vmem>>, %arg10: memref<1x1xf32, #tpu.memory_space<vmem>>, %arg11: memref<1x8x8xf32, #tpu.memory_space<vmem>>) attributes {dimension_semantics = [#tpu.dimension_semantics<parallel>], iteration_bounds = array<i64: 2>, scalar_prefetch = 0 : i64, scratch_operands = 0 : i64, tpu.core_type = #tpu.core_type<tc>, window_params = [{transform_indices = @transform_0, window_bounds = array<i64: 1, 8, 16>}, {transform_indices = @transform_1, window_bounds = array<i64: 1, 64, 4>}, {pipeline_mode = #tpu.pipeline_mode<synchronous>, transform_indices = @transform_2, window_bounds = array<i64: 16, 32>}, {pipeline_mode = #tpu.pipeline_mode<synchronous>, transform_indices = @transform_3, window_bounds = array<i64: 4, 32>}, {pipeline_mode = #tpu.pipeline_mode<synchronous>, transform_indices = @transform_4, window_bounds = array<i64: 16, 32>}, {pipeline_mode = #tpu.pipeline_mode<synchronous>, transform_indices = @transform_5, window_bounds = array<i64: 1, 32>}, {pipeline_mode = #tpu.pipeline_mode<synchronous>, transform_indices = @transform_6, window_bounds = array<i64: 32, 32>}, {pipeline_mode = #tpu.pipeline_mode<synchronous>, transform_indices = @transform_7, window_bounds = array<i64: 1, 32>}, {pipeline_mode = #tpu.pipeline_mode<synchronous>, transform_indices = @transform_8, window_bounds = array<i64: 1, 32>}, {pipeline_mode = #tpu.pipeline_mode<synchronous>, transform_indices = @transform_9, window_bounds = array<i64: 1, 1>}, {transform_indices = @transform_10, window_bounds = array<i64: 1, 8, 8>}]} {
    %c0 = arith.constant 0 : index
    %c0_0 = arith.constant 0 : index
    %c0_1 = arith.constant 0 : index
    %0 = vector.load %arg1[%c0, %c0_0, %c0_1] : memref<1x8x16xf32, #tpu.memory_space<vmem>>, vector<1x8x16xf32>
    %1 = vector.shape_cast %0 : vector<1x8x16xf32> to vector<8x16xf32>
    %c0_2 = arith.constant 0 : index
    %c0_3 = arith.constant 0 : index
    %c0_4 = arith.constant 0 : index
    %2 = vector.load %arg2[%c0_2, %c0_3, %c0_4] : memref<1x64x4xf32, #tpu.memory_space<vmem>>, vector<1x64x4xf32>
    %3 = vector.shape_cast %2 : vector<1x64x4xf32> to vector<64x4xf32>
    %c0_5 = arith.constant 0 : index
    %c0_6 = arith.constant 0 : index
    %4 = vector.load %arg3[%c0_5, %c0_6] : memref<16x32xf32, #tpu.memory_space<vmem>>, vector<16x32xf32>
    %cst = arith.constant dense<0.000000e+00> : vector<8x32xf32>
    %5 = tpu.matmul %1, %4, %cst {dimension_numbers = #tpu.dot_dimension_numbers<[1], [0], [0], [1], [0, 0, 1, 1], [], []>} : vector<8x16xf32>, vector<16x32xf32>, vector<8x32xf32> -> vector<8x32xf32>
    %c0_7 = arith.constant 0 : index
    %c0_8 = arith.constant 0 : index
    %6 = vector.load %arg6[%c0_7, %c0_8] : memref<1x32xf32, #tpu.memory_space<vmem>>, vector<1x32xf32>
    %7 = vector.broadcast %6 : vector<1x32xf32> to vector<8x32xf32>
    %8 = arith.addf %5, %7 : vector<8x32xf32>
    %c0_9 = arith.constant 0 : index
    %c0_10 = arith.constant 0 : index
    %9 = vector.load %arg5[%c0_9, %c0_10] : memref<16x32xf32, #tpu.memory_space<vmem>>, vector<16x32xf32>
    %cst_11 = arith.constant dense<0.000000e+00> : vector<8x32xf32>
    %10 = tpu.matmul %1, %9, %cst_11 {dimension_numbers = #tpu.dot_dimension_numbers<[1], [0], [0], [1], [0, 0, 1, 1], [], []>} : vector<8x16xf32>, vector<16x32xf32>, vector<8x32xf32> -> vector<8x32xf32>
    %c0_12 = arith.constant 0 : index
    %c0_13 = arith.constant 0 : index
    %11 = vector.load %arg4[%c0_12, %c0_13] : memref<4x32xf32, #tpu.memory_space<vmem>>, vector<4x32xf32>
    %cst_14 = arith.constant dense<0.000000e+00> : vector<64x32xf32>
    %12 = tpu.matmul %3, %11, %cst_14 {dimension_numbers = #tpu.dot_dimension_numbers<[1], [0], [0], [1], [0, 0, 1, 1], [], []>} : vector<64x4xf32>, vector<4x32xf32>, vector<64x32xf32> -> vector<64x32xf32>
    %13 = vector.shape_cast %12 : vector<64x32xf32> to vector<1x8x8x32xf32>
    %14 = vector.shape_cast %8 : vector<8x32xf32> to vector<1x8x1x32xf32>
    %15 = vector.broadcast %14 : vector<1x8x1x32xf32> to vector<1x8x8x32xf32>
    %16 = arith.addf %13, %15 : vector<1x8x8x32xf32>
    %17 = vector.shape_cast %10 : vector<8x32xf32> to vector<1x1x8x32xf32>
    %18 = vector.broadcast %17 : vector<1x1x8x32xf32> to vector<1x8x8x32xf32>
    %19 = arith.addf %16, %18 : vector<1x8x8x32xf32>
    %cst_15 = arith.constant 0.000000e+00 : f32
    %20 = vector.broadcast %cst_15 : f32 to vector<1x8x8x32xf32>
    %21 = arith.maximumf %19, %20 : vector<1x8x8x32xf32>
    %22 = vector.shape_cast %21 : vector<1x8x8x32xf32> to vector<64x32xf32>
    %c0_16 = arith.constant 0 : index
    %c0_17 = arith.constant 0 : index
    %23 = vector.load %arg7[%c0_16, %c0_17] : memref<32x32xf32, #tpu.memory_space<vmem>>, vector<32x32xf32>
    %cst_18 = arith.constant dense<0.000000e+00> : vector<64x32xf32>
    %24 = tpu.matmul %22, %23, %cst_18 {dimension_numbers = #tpu.dot_dimension_numbers<[1], [0], [0], [1], [0, 0, 1, 1], [], []>} : vector<64x32xf32>, vector<32x32xf32>, vector<64x32xf32> -> vector<64x32xf32>
    %c0_19 = arith.constant 0 : index
    %c0_20 = arith.constant 0 : index
    %25 = vector.load %arg8[%c0_19, %c0_20] : memref<1x32xf32, #tpu.memory_space<vmem>>, vector<1x32xf32>
    %26 = vector.broadcast %25 : vector<1x32xf32> to vector<64x32xf32>
    %27 = arith.addf %24, %26 : vector<64x32xf32>
    %cst_21 = arith.constant 0.000000e+00 : f32
    %28 = vector.broadcast %cst_21 : f32 to vector<64x32xf32>
    %29 = arith.maximumf %27, %28 : vector<64x32xf32>
    %30 = vector.shape_cast %29 : vector<64x32xf32> to vector<1x8x8x32xf32>
    %c0_22 = arith.constant 0 : index
    %c0_23 = arith.constant 0 : index
    %31 = vector.load %arg9[%c0_22, %c0_23] : memref<1x32xf32, #tpu.memory_space<vmem>>, vector<1x32xf32>
    %32 = vector.shape_cast %31 : vector<1x32xf32> to vector<1x1x1x32xf32>
    %33 = vector.broadcast %32 : vector<1x1x1x32xf32> to vector<1x8x8x32xf32>
    %34 = arith.mulf %30, %33 : vector<1x8x8x32xf32>
    %cst_24 = arith.constant dense<0.000000e+00> : vector<1x8x8xf32>
    %35 = vector.multi_reduction <add>, %34, %cst_24 [3] : vector<1x8x8x32xf32> to vector<1x8x8xf32>
    %c0_25 = arith.constant 0 : index
    %c0_26 = arith.constant 0 : index
    %36 = vector.load %arg10[%c0_25, %c0_26] : memref<1x1xf32, #tpu.memory_space<vmem>>, vector<1x1xf32>
    %37 = vector.shape_cast %36 : vector<1x1xf32> to vector<1x1x1xf32>
    %38 = vector.broadcast %37 : vector<1x1x1xf32> to vector<1x8x8xf32>
    %39 = arith.addf %35, %38 : vector<1x8x8xf32>
    %c0_27 = arith.constant 0 : index
    %c0_28 = arith.constant 0 : index
    %c0_29 = arith.constant 0 : index
    %40 = vector.load %arg11[%c0_27, %c0_28, %c0_29] : memref<1x8x8xf32, #tpu.memory_space<vmem>>, vector<1x8x8xf32>
    tpu.vector_store %arg11[%c0_27, %c0_28, %c0_29], %39 {strides = array<i32>} : memref<1x8x8xf32, #tpu.memory_space<vmem>>, vector<1x8x8xf32>,
    return
  }
  func.func @transform_0(%arg0: i32) -> (i32, i32, i32) {
    %c0_i32 = arith.constant 0 : i32
    %c0_i32_0 = arith.constant 0 : i32
    %c0_i32_1 = arith.constant 0 : i32
    return %arg0, %c0_i32, %c0_i32_0 : i32, i32, i32
  }
  func.func @transform_1(%arg0: i32) -> (i32, i32, i32) {
    %c0_i32 = arith.constant 0 : i32
    %c0_i32_0 = arith.constant 0 : i32
    %c0_i32_1 = arith.constant 0 : i32
    return %arg0, %c0_i32, %c0_i32_0 : i32, i32, i32
  }
  func.func @transform_2(%arg0: i32) -> (i32, i32) {
    %c0_i32 = arith.constant 0 : i32
    %c0_i32_0 = arith.constant 0 : i32
    %c0_i32_1 = arith.constant 0 : i32
    return %c0_i32, %c0_i32_0 : i32, i32
  }
  func.func @transform_3(%arg0: i32) -> (i32, i32) {
    %c0_i32 = arith.constant 0 : i32
    %c0_i32_0 = arith.constant 0 : i32
    %c0_i32_1 = arith.constant 0 : i32
    return %c0_i32, %c0_i32_0 : i32, i32
  }
  func.func @transform_4(%arg0: i32) -> (i32, i32) {
    %c0_i32 = arith.constant 0 : i32
    %c0_i32_0 = arith.constant 0 : i32
    %c0_i32_1 = arith.constant 0 : i32
    return %c0_i32, %c0_i32_0 : i32, i32
  }
  func.func @transform_5(%arg0: i32) -> (i32, i32) {
    %c0_i32 = arith.constant 0 : i32
    %c0_i32_0 = arith.constant 0 : i32
    %c0_i32_1 = arith.constant 0 : i32
    return %c0_i32, %c0_i32_0 : i32, i32
  }
  func.func @transform_6(%arg0: i32) -> (i32, i32) {
    %c0_i32 = arith.constant 0 : i32
    %c0_i32_0 = arith.constant 0 : i32
    %c0_i32_1 = arith.constant 0 : i32
    return %c0_i32, %c0_i32_0 : i32, i32
  }
  func.func @transform_7(%arg0: i32) -> (i32, i32) {
    %c0_i32 = arith.constant 0 : i32
    %c0_i32_0 = arith.constant 0 : i32
    %c0_i32_1 = arith.constant 0 : i32
    return %c0_i32, %c0_i32_0 : i32, i32
  }
  func.func @transform_8(%arg0: i32) -> (i32, i32) {
    %c0_i32 = arith.constant 0 : i32
    %c0_i32_0 = arith.constant 0 : i32
    %c0_i32_1 = arith.constant 0 : i32
    return %c0_i32, %c0_i32_0 : i32, i32
  }
  func.func @transform_9(%arg0: i32) -> (i32, i32) {
    %c0_i32 = arith.constant 0 : i32
    %c0_i32_0 = arith.constant 0 : i32
    %c0_i32_1 = arith.constant 0 : i32
    return %c0_i32, %c0_i32_0 : i32, i32
  }
  func.func @transform_10(%arg0: i32) -> (i32, i32, i32) {
    %c0_i32 = arith.constant 0 : i32
    %c0_i32_0 = arith.constant 0 : i32
    %c0_i32_1 = arith.constant 0 : i32
    return %arg0, %c0_i32, %c0_i32_0 : i32, i32, i32
  }
}

</mosaic_0001>

<llo_original>
// kernel: tpu_custom_call.1
$region0: #{tpu_custom_call.1}
  #allocation0 [shape = 'u32[]', space=smem, size = 0x4, offset = 0x4, fixed_abs, tag = 'smem constant byte address 0x4 - core index']
  #allocation1 [shape = 'u32[144,128]{1,0:T(1,128)}', space=vmem, size = 0x12000, scoped, tag = 'internal scratch']
  #allocation2 [shape = 'f32[1,1]{1,0:T(1,128)S(1)}', space=vmem, size = 0x200, scoped, tag = 'scoped memory for tpu_custom_call.1']
  %s0 = inlined_call_operand.vmem [shape: f32[2,8,16], index: 0, kind: input, shape index: {}]
  %s1 = inlined_call_operand.vmem [shape: f32[2,64,4], index: 1, kind: input, shape index: {}]
  %s2 = inlined_call_operand.vmem [shape: f32[16,32], index: 2, kind: input, shape index: {}]
  %s3 = inlined_call_operand.vmem [shape: f32[4,32], index: 3, kind: input, shape index: {}]
  %s4 = inlined_call_operand.vmem [shape: f32[16,32], index: 4, kind: input, shape index: {}]
  %s5 = inlined_call_operand.vmem [shape: f32[1,32], index: 5, kind: input, shape index: {}]
  %s6 = inlined_call_operand.vmem [shape: f32[32,32], index: 6, kind: input, shape index: {}]
  %s7 = inlined_call_operand.vmem [shape: f32[1,32], index: 7, kind: input, shape index: {}]
  %s8 = inlined_call_operand.vmem [shape: f32[1,32], index: 8, kind: input, shape index: {}]
  %s9 = inlined_call_operand.<no memory space> [shape: f32[1,1], index: 9, kind: input, shape index: {}]
  %s10 = inlined_call_operand.hbm [shape: f32[2,8,8], index: 10, kind: output, shape index: {}]
  %s11 = sld [smem:[#allocation0]]
  $region73: #{tpu_custom_call.1} parent=0
    _
  %s13 = ssub.s32 1, %s11
  %s14 = scalar_select 0, %s13, %s11
  %v15 = vstv %s9
  %16 = vst [vmem:[#allocation2] sm:$0x1] %v15
  $region1: #{tpu_custom_call.1} parent=0
    #allocation3 [shape = 'u8[8192]{0}', space=vmem, size = 0x2000, scoped, tag = 'output window, operand 0']
    #allocation4 [shape = 's32[2]{0}', space=sflag, size = 0x8, scoped, tag = 'scoped memory for tpu_custom_call.1']
    %17 = vsyncpa [#allocation4], 0
    %s18 = scalar_lea.sflag [#allocation4], 1
    %19 = vsyncpa %s18, 0
    loop: start=0, step=1, limit=4
    $region2: #{tpu_custom_call.1} parent=1 // loop_pre_header
      _
    $region3: #{tpu_custom_call.1} parent=1 // loop_header
      %s21 = sphi 0, %s25
      %p22 = scmp.ge.s32.totalorder %s21, 4
      %s31 = sphi 0, %s33
      %s34 = sphi 0, %s31
      %s35 = sphi 0, %s34
      %s51 = sphi 0, %s35
      %s57 = sphi 0, %s59
      %s60 = sphi 0, %s57
      %s61 = sphi 0, %s60
      %s77 = sphi 0, %s61
      %s81 = sphi 0, %s81
      %s83 = sphi 0, %s81
      %s84 = sphi 0, %s83
      %s98 = sphi 0, %s84
      %s102 = sphi 0, %s102
      %s104 = sphi 0, %s102
      %s105 = sphi 0, %s104
      %s119 = sphi 0, %s105
      %s123 = sphi 0, %s123
      %s125 = sphi 0, %s123
      %s126 = sphi 0, %s125
      %s140 = sphi 0, %s126
      %s144 = sphi 0, %s144
      %s146 = sphi 0, %s144
      %s147 = sphi 0, %s146
      %s161 = sphi 0, %s147
      %s165 = sphi 0, %s165
      %s167 = sphi 0, %s165
      %s168 = sphi 0, %s167
      %s182 = sphi 0, %s168
      %s186 = sphi 0, %s186
      %s188 = sphi 0, %s186
      %s189 = sphi 0, %s188
      %s203 = sphi 0, %s189
      %s207 = sphi 0, %s207
      %s209 = sphi 0, %s207
      %s210 = sphi 0, %s209
      %s224 = sphi 0, %s210
      %s228 = sphi 0, %s228
      %s230 = sphi 0, %s228
      %s231 = sphi 0, %s230
      %s245 = sphi 0, %s231
      %s251 = sphi 0, %s253
      %s254 = sphi 0, %s251
      %s255 = sphi 0, %s254
      %s271 = sphi 0, %s255
    $region4: #{tpu_custom_call.1} parent=1 // loop_header_branch
      %24 = sbr.rel (%p22) target = $region8
    $region5: #{tpu_custom_call.1} parent=1 // loop_body
      %s26 = ssub.s32 %s21, 1
      %s27 = ssub.s32 %s21, 2
      %s28 = sadd.s32 %s21, 1
      %s29 = ssub.s32 %s21, %s28
      %p30 = scmp.eq.s32.totalorder %s29, 0
      %s32 = sadd.s32 %s31, 1
      %s33 = scalar_select %p30, %s31, %s32
      %p36 = pneg %p30
      %p37 = scmp.eq.s32.totalorder %s21, 1
      %p38 = por %p36, %p37
      %p39 = scmp.ne.s32.totalorder %s31, %s34
      %p40 = scmp.eq.s32.totalorder %s21, 0
      %p41 = por %p39, %p40
      %p42 = scmp.ne.s32.totalorder %s31, %s34
      %p43 = scmp.eq.s32.totalorder %s26, 1
      %p44 = por %p42, %p43
      %p45 = scmp.ne.s32.totalorder %s34, %s35
      %p46 = scmp.eq.s32.totalorder %s26, 0
      %p47 = por %p45, %p46
      %p48 = scmp.ne.s32.totalorder %s34, %s35
      %p49 = scmp.eq.s32.totalorder %s27, 1
      %p50 = por %p48, %p49
      %p52 = scmp.ne.s32.totalorder %s35, %s51
      %p53 = scmp.eq.s32.totalorder %s27, 0
      %p54 = por %p52, %p53
      %s55 = ssub.s32 %s21, %s28
      %p56 = scmp.eq.s32.totalorder %s55, 0
      %s58 = sadd.s32 %s57, 1
      %s59 = scalar_select %p56, %s57, %s58
      %p62 = pneg %p56
      %p63 = scmp.eq.s32.totalorder %s21, 1
      %p64 = por %p62, %p63
      %p65 = scmp.ne.s32.totalorder %s57, %s60
      %p66 = scmp.eq.s32.totalorder %s21, 0
      %p67 = por %p65, %p66
      %p68 = scmp.ne.s32.totalorder %s57, %s60
      %p69 = scmp.eq.s32.totalorder %s26, 1
      %p70 = por %p68, %p69
      %p71 = scmp.ne.s32.totalorder %s60, %s61
      %p72 = scmp.eq.s32.totalorder %s26, 0
      %p73 = por %p71, %p72
      %p74 = scmp.ne.s32.totalorder %s60, %s61
      %p75 = scmp.eq.s32.totalorder %s27, 1
      %p76 = por %p74, %p75
      %p78 = scmp.ne.s32.totalorder %s61, %s77
      %p79 = scmp.eq.s32.totalorder %s27, 0
      %p80 = por %p78, %p79
      %s82 = sadd.s32 %s81, 1
      %p85 = scmp.eq.s32.totalorder %s21, 1
      %p86 = scmp.ne.s32.totalorder %s81, %s83
      %p87 = scmp.eq.s32.totalorder %s21, 0
      %p88 = por %p86, %p87
      %p89 = scmp.ne.s32.totalorder %s81, %s83
      %p90 = scmp.eq.s32.totalorder %s26, 1
      %p91 = por %p89, %p90
      %p92 = scmp.ne.s32.totalorder %s83, %s84
      %p93 = scmp.eq.s32.totalorder %s26, 0
      %p94 = por %p92, %p93
      %p95 = scmp.ne.s32.totalorder %s83, %s84
      %p96 = scmp.eq.s32.totalorder %s27, 1
      %p97 = por %p95, %p96
      %p99 = scmp.ne.s32.totalorder %s84, %s98
      %p100 = scmp.eq.s32.totalorder %s27, 0
      %p101 = por %p99, %p100
      %s103 = sadd.s32 %s102, 1
      %p106 = scmp.eq.s32.totalorder %s21, 1
      %p107 = scmp.ne.s32.totalorder %s102, %s104
      %p108 = scmp.eq.s32.totalorder %s21, 0
      %p109 = por %p107, %p108
      %p110 = scmp.ne.s32.totalorder %s102, %s104
      %p111 = scmp.eq.s32.totalorder %s26, 1
      %p112 = por %p110, %p111
      %p113 = scmp.ne.s32.totalorder %s104, %s105
      %p114 = scmp.eq.s32.totalorder %s26, 0
      %p115 = por %p113, %p114
      %p116 = scmp.ne.s32.totalorder %s104, %s105
      %p117 = scmp.eq.s32.totalorder %s27, 1
      %p118 = por %p116, %p117
      %p120 = scmp.ne.s32.totalorder %s105, %s119
      %p121 = scmp.eq.s32.totalorder %s27, 0
      %p122 = por %p120, %p121
      %s124 = sadd.s32 %s123, 1
      %p127 = scmp.eq.s32.totalorder %s21, 1
      %p128 = scmp.ne.s32.totalorder %s123, %s125
      %p129 = scmp.eq.s32.totalorder %s21, 0
      %p130 = por %p128, %p129
      %p131 = scmp.ne.s32.totalorder %s123, %s125
      %p132 = scmp.eq.s32.totalorder %s26, 1
      %p133 = por %p131, %p132
      %p134 = scmp.ne.s32.totalorder %s125, %s126
      %p135 = scmp.eq.s32.totalorder %s26, 0
      %p136 = por %p134, %p135
      %p137 = scmp.ne.s32.totalorder %s125, %s126
      %p138 = scmp.eq.s32.totalorder %s27, 1
      %p139 = por %p137, %p138
      %p141 = scmp.ne.s32.totalorder %s126, %s140
      %p142 = scmp.eq.s32.totalorder %s27, 0
      %p143 = por %p141, %p142
      %s145 = sadd.s32 %s144, 1
      %p148 = scmp.eq.s32.totalorder %s21, 1
      %p149 = scmp.ne.s32.totalorder %s144, %s146
      %p150 = scmp.eq.s32.totalorder %s21, 0
      %p151 = por %p149, %p150
      %p152 = scmp.ne.s32.totalorder %s144, %s146
      %p153 = scmp.eq.s32.totalorder %s26, 1
      %p154 = por %p152, %p153
      %p155 = scmp.ne.s32.totalorder %s146, %s147
      %p156 = scmp.eq.s32.totalorder %s26, 0
      %p157 = por %p155, %p156
      %p158 = scmp.ne.s32.totalorder %s146, %s147
      %p159 = scmp.eq.s32.totalorder %s27, 1
      %p160 = por %p158, %p159
      %p162 = scmp.ne.s32.totalorder %s147, %s161
      %p163 = scmp.eq.s32.totalorder %s27, 0
      %p164 = por %p162, %p163
      %s166 = sadd.s32 %s165, 1
      %p169 = scmp.eq.s32.totalorder %s21, 1
      %p170 = scmp.ne.s32.totalorder %s165, %s167
      %p171 = scmp.eq.s32.totalorder %s21, 0
      %p172 = por %p170, %p171
      %p173 = scmp.ne.s32.totalorder %s165, %s167
      %p174 = scmp.eq.s32.totalorder %s26, 1
      %p175 = por %p173, %p174
      %p176 = scmp.ne.s32.totalorder %s167, %s168
      %p177 = scmp.eq.s32.totalorder %s26, 0
      %p178 = por %p176, %p177
      %p179 = scmp.ne.s32.totalorder %s167, %s168
      %p180 = scmp.eq.s32.totalorder %s27, 1
      %p181 = por %p179, %p180
      %p183 = scmp.ne.s32.totalorder %s168, %s182
      %p184 = scmp.eq.s32.totalorder %s27, 0
      %p185 = por %p183, %p184
      %s187 = sadd.s32 %s186, 1
      %p190 = scmp.eq.s32.totalorder %s21, 1
      %p191 = scmp.ne.s32.totalorder %s186, %s188
      %p192 = scmp.eq.s32.totalorder %s21, 0
      %p193 = por %p191, %p192
      %p194 = scmp.ne.s32.totalorder %s186, %s188
      %p195 = scmp.eq.s32.totalorder %s26, 1
      %p196 = por %p194, %p195
      %p197 = scmp.ne.s32.totalorder %s188, %s189
      %p198 = scmp.eq.s32.totalorder %s26, 0
      %p199 = por %p197, %p198
      %p200 = scmp.ne.s32.totalorder %s188, %s189
      %p201 = scmp.eq.s32.totalorder %s27, 1
      %p202 = por %p200, %p201
      %p204 = scmp.ne.s32.totalorder %s189, %s203
      %p205 = scmp.eq.s32.totalorder %s27, 0
      %p206 = por %p204, %p205
      %s208 = sadd.s32 %s207, 1
      %p211 = scmp.eq.s32.totalorder %s21, 1
      %p212 = scmp.ne.s32.totalorder %s207, %s209
      %p213 = scmp.eq.s32.totalorder %s21, 0
      %p214 = por %p212, %p213
      %p215 = scmp.ne.s32.totalorder %s207, %s209
      %p216 = scmp.eq.s32.totalorder %s26, 1
      %p217 = por %p215, %p216
      %p218 = scmp.ne.s32.totalorder %s209, %s210
      %p219 = scmp.eq.s32.totalorder %s26, 0
      %p220 = por %p218, %p219
      %p221 = scmp.ne.s32.totalorder %s209, %s210
      %p222 = scmp.eq.s32.totalorder %s27, 1
      %p223 = por %p221, %p222
      %p225 = scmp.ne.s32.totalorder %s210, %s224
      %p226 = scmp.eq.s32.totalorder %s27, 0
      %p227 = por %p225, %p226
      %s229 = sadd.s32 %s228, 1
      %p232 = scmp.eq.s32.totalorder %s21, 1
      %p233 = scmp.ne.s32.totalorder %s228, %s230
      %p234 = scmp.eq.s32.totalorder %s21, 0
      %p235 = por %p233, %p234
      %p236 = scmp.ne.s32.totalorder %s228, %s230
      %p237 = scmp.eq.s32.totalorder %s26, 1
      %p238 = por %p236, %p237
      %p239 = scmp.ne.s32.totalorder %s230, %s231
      %p240 = scmp.eq.s32.totalorder %s26, 0
      %p241 = por %p239, %p240
      %p242 = scmp.ne.s32.totalorder %s230, %s231
      %p243 = scmp.eq.s32.totalorder %s27, 1
      %p244 = por %p242, %p243
      %p246 = scmp.ne.s32.totalorder %s231, %s245
      %p247 = scmp.eq.s32.totalorder %s27, 0
      %p248 = por %p246, %p247
      %s249 = ssub.s32 %s21, %s28
      %p250 = scmp.eq.s32.totalorder %s249, 0
      %s252 = sadd.s32 %s251, 1
      %s253 = scalar_select %p250, %s251, %s252
      %p256 = pneg %p250
      %p257 = scmp.eq.s32.totalorder %s21, 1
      %p258 = por %p256, %p257
      %p259 = scmp.ne.s32.totalorder %s251, %s254
      %p260 = scmp.eq.s32.totalorder %s21, 0
      %p261 = por %p259, %p260
      %p262 = scmp.ne.s32.totalorder %s251, %s254
      %p263 = scmp.eq.s32.totalorder %s26, 1
      %p264 = por %p262, %p263
      %p265 = scmp.ne.s32.totalorder %s254, %s255
      %p266 = scmp.eq.s32.totalorder %s26, 0
      %p267 = por %p265, %p266
      %p268 = scmp.ne.s32.totalorder %s254, %s255
      %p269 = scmp.eq.s32.totalorder %s27, 1
      %p270 = por %p268, %p269
      %p272 = scmp.ne.s32.totalorder %s255, %s271
      %p273 = scmp.eq.s32.totalorder %s27, 0
      %p274 = por %p272, %p273
      %p275 = scmp.le.s32.totalorder 1, %s21
      %p276 = scmp.lt.s32.totalorder %s21, 3
      %p277 = pnand %p275, %p276
      %p278 = pneg %p277
      // Predicated region
      $region9: #{tpu_custom_call.1} parent=5 // pred_check
        _
      $region10: #{tpu_custom_call.1} parent=5 // pred_check_branch
        %280 = sbr.rel (%p277) target = $region12
      $region11: #{tpu_custom_call.1} parent=5 // pred_region
        %s281 = ssub.s32 %s21, 1
        // Predicated region
        $region13: #{tpu_custom_call.1} parent=11 // pred_check
          %p282 = pneg %p94
        $region14: #{tpu_custom_call.1} parent=11 // pred_check_branch
          %284 = sbr.rel (%p282) target = $region16
        $region15: #{tpu_custom_call.1} parent=11 // pred_region
          _
        $region16: #{tpu_custom_call.1} parent=11 // pred_fallthru
          _
        // Predicated region
        $region17: #{tpu_custom_call.1} parent=11 // pred_check
          %p285 = pneg %p115
        $region18: #{tpu_custom_call.1} parent=11 // pred_check_branch
          %287 = sbr.rel (%p285) target = $region20
        $region19: #{tpu_custom_call.1} parent=11 // pred_region
          _
        $region20: #{tpu_custom_call.1} parent=11 // pred_fallthru
          _
        // Predicated region
        $region21: #{tpu_custom_call.1} parent=11 // pred_check
          %p288 = pneg %p136
        $region22: #{tpu_custom_call.1} parent=11 // pred_check_branch
          %290 = sbr.rel (%p288) target = $region24
        $region23: #{tpu_custom_call.1} parent=11 // pred_region
          _
        $region24: #{tpu_custom_call.1} parent=11 // pred_fallthru
          _
        // Predicated region
        $region25: #{tpu_custom_call.1} parent=11 // pred_check
          %p291 = pneg %p157
        $region26: #{tpu_custom_call.1} parent=11 // pred_check_branch
          %293 = sbr.rel (%p291) target = $region28
        $region27: #{tpu_custom_call.1} parent=11 // pred_region
          _
        $region28: #{tpu_custom_call.1} parent=11 // pred_fallthru
          _
        // Predicated region
        $region29: #{tpu_custom_call.1} parent=11 // pred_check
          %p294 = pneg %p178
        $region30: #{tpu_custom_call.1} parent=11 // pred_check_branch
          %296 = sbr.rel (%p294) target = $region32
        $region31: #{tpu_custom_call.1} parent=11 // pred_region
          _
        $region32: #{tpu_custom_call.1} parent=11 // pred_fallthru
          _
        // Predicated region
        $region33: #{tpu_custom_call.1} parent=11 // pred_check
          %p297 = pneg %p199
        $region34: #{tpu_custom_call.1} parent=11 // pred_check_branch
          %299 = sbr.rel (%p297) target = $region36
        $region35: #{tpu_custom_call.1} parent=11 // pred_region
          _
        $region36: #{tpu_custom_call.1} parent=11 // pred_fallthru
          _
        // Predicated region
        $region37: #{tpu_custom_call.1} parent=11 // pred_check
          %p300 = pneg %p220
        $region38: #{tpu_custom_call.1} parent=11 // pred_check_branch
          %302 = sbr.rel (%p300) target = $region40
        $region39: #{tpu_custom_call.1} parent=11 // pred_region
          _
        $region40: #{tpu_custom_call.1} parent=11 // pred_fallthru
          _
        // Predicated region
        $region41: #{tpu_custom_call.1} parent=11 // pred_check
          %p303 = pneg %p241
        $region42: #{tpu_custom_call.1} parent=11 // pred_check_branch
          %305 = sbr.rel (%p303) target = $region44
        $region43: #{tpu_custom_call.1} parent=11 // pred_region
          _
        $region44: #{tpu_custom_call.1} parent=11 // pred_fallthru
          _
      $region12: #{tpu_custom_call.1} parent=5 // pred_fallthru
        _
      %p306 = scmp.lt.s32.totalorder %s21, 2
      // Predicated region
      $region45: #{tpu_custom_call.1} parent=5 // pred_check
        %p307 = pneg %p306
      $region46: #{tpu_custom_call.1} parent=5 // pred_check_branch
        %309 = sbr.rel (%p307) target = $region48
      $region47: #{tpu_custom_call.1} parent=5 // pred_region
        // Predicated region
        $region49: #{tpu_custom_call.1} parent=47 // pred_check
          %p310 = pneg %p41
        $region50: #{tpu_custom_call.1} parent=47 // pred_check_branch
          %312 = sbr.rel (%p310) target = $region52
        $region51: #{tpu_custom_call.1} parent=47 // pred_region
          %p313 = scmp.lt.s32.totalorder %s21, 1
          %s314 = scalar_select %p313, %s21, 1
          %s315 = smul.addr %s314, 8
          %s316 = scalar_lea.vmem %s0, %s315
        $region52: #{tpu_custom_call.1} parent=47 // pred_fallthru
          _
        // Predicated region
        $region53: #{tpu_custom_call.1} parent=47 // pred_check
          %p317 = pneg %p67
        $region54: #{tpu_custom_call.1} parent=47 // pred_check_branch
          %319 = sbr.rel (%p317) target = $region56
        $region55: #{tpu_custom_call.1} parent=47 // pred_region
          %p320 = scmp.lt.s32.totalorder %s21, 1
          %s321 = scalar_select %p320, %s21, 1
          %s322 = smul.addr %s321, 8
          %s323 = smul.addr %s322, 8
          %s324 = scalar_lea.vmem %s1, %s323
        $region56: #{tpu_custom_call.1} parent=47 // pred_fallthru
          _
      $region48: #{tpu_custom_call.1} parent=5 // pred_fallthru
        _
      %p325 = scmp.le.s32.totalorder 1, %s21
      %p326 = scmp.lt.s32.totalorder %s21, 3
      %p327 = pnand %p325, %p326
      %p328 = pneg %p327
      // Predicated region
      $region57: #{tpu_custom_call.1} parent=5 // pred_check
        _
      $region58: #{tpu_custom_call.1} parent=5 // pred_check_branch
        %330 = sbr.rel (%p327) target = $region60
      $region59: #{tpu_custom_call.1} parent=5 // pred_region
        %s331 = ssub.s32 %s21, 1
        %p332 = scmp.lt.s32.totalorder %s26, 1
        %s333 = scalar_select %p332, %s26, 1
        %s334 = smul.addr %s333, 8
        %s335 = scalar_lea.vmem %s0, %s334
        %p336 = pneg %p47
        %p337 = pneg %p44
        %p338 = scmp.lt.s32.totalorder %s26, 1
        %s339 = scalar_select %p338, %s26, 1
        %s340 = smul.addr %s339, 8
        %s341 = smul.addr %s340, 8
        %s342 = scalar_lea.vmem %s1, %s341
        %p343 = pneg %p73
        %p344 = pneg %p70
        %p345 = pneg %p94
        %p346 = pneg %p91
        %p347 = pneg %p115
        %p348 = pneg %p112
        %p349 = pneg %p136
        %p350 = pneg %p133
        %p351 = pneg %p157
        %p352 = pneg %p154
        %p353 = pneg %p178
        %p354 = pneg %p175
        %p355 = pneg %p199
        %p356 = pneg %p196
        %p357 = pneg %p220
        %p358 = pneg %p217
        %p359 = pneg %p241
        %p360 = pneg %p238
        %p361 = pneg %p267
        %p362 = pneg %p264
        %s363 = sand.u32 %s254, 1
        %s364 = scalar_lea.sflag [#allocation4], %s363
        %s365 = sand.u32 %s254, 1
        %s366 = smul.addr %s365, 8
        %s367 = scalar_lea.vmem [#allocation3], %s366
        %p368 = scmp.lt.s32.totalorder %s26, 1
        %s369 = scalar_select %p368, %s26, 1
        %s370 = smul.addr %s369, 8
        %s371 = scalar_lea.vmem %s0, %s370
        %p372 = scmp.lt.s32.totalorder %s26, 1
        %s373 = scalar_select %p372, %s26, 1
        %s374 = smul.addr %s373, 8
        %s375 = smul.addr %s374, 8
        %s376 = scalar_lea.vmem %s1, %s375
        %v377 = vld [vmem:[%s371] sm:$0xff]
        %v378 = vld [vmem:[%s376] sm:$0xff]
        %v379 = vld [vmem:[%s376 + $0x8] sm:$0xff]
        %v380 = vld [vmem:[%s376 + $0x10] sm:$0xff]
        %v381 = vld [vmem:[%s376 + $0x18] sm:$0xff]
        %v382 = vld [vmem:[%s376 + $0x20] sm:$0xff]
        %v383 = vld [vmem:[%s376 + $0x28] sm:$0xff]
        %v384 = vld [vmem:[%s376 + $0x30] sm:$0xff]
        %v385 = vld [vmem:[%s376 + $0x38] sm:$0xff]
        %v386 = vld [vmem:[%s2] sm:$0xff]
        %v387 = vld [vmem:[%s2 + $0x8] sm:$0xff]
        %v388 = vld [vmem:[%s5] sm:$0x1]
        %v390 = vlaneseq
        %v391 = vshrl.u32 %v390, 7
        %v392 = vsub.s32 0, %v391
        %v393 = vrot.slane %v388, %v392
        %vm395 = vcmask 130048
        %v397 = vsel %vm395, %v377, 0
        %399 = vmatprep.subr.mxu0 0.0
        %400 = vmatpush1.msra.mxu0 %v386
        %401 = vmatprep.subr.mxu0 0.0
        %402 = vmatpush1.msra.mxu0 %v387
        %403 = vmatprep.subr.mxu0 0.0
        %404 = vmatpush1.msra.mxu0 0.0
        %405 = vmatprep.subr.mxu0 0.0
        %406 = vmatpush1.msra.mxu0 0.0
        %407 = vmatprep.subr.mxu0 0.0
        %408 = vmatpush1.msra.mxu0 0.0
        %409 = vmatprep.subr.mxu0 0.0
        %410 = vmatpush1.msra.mxu0 0.0
        %411 = vmatprep.subr.mxu0 0.0
        %412 = vmatpush1.msra.mxu0 0.0
        %413 = vmatprep.subr.mxu0 0.0
        %414 = vmatpush1.msra.mxu0 0.0
        %415 = vmatprep.subr.mxu0 0.0
        %416 = vmatpush1.msra.mxu0 0.0
        %417 = vmatprep.subr.mxu0 0.0
        %418 = vmatpush1.msra.mxu0 0.0
        %419 = vmatprep.subr.mxu0 0.0
        %420 = vmatpush1.msra.mxu0 0.0
        %421 = vmatprep.subr.mxu0 0.0
        %422 = vmatpush1.msra.mxu0 0.0
        %423 = vmatprep.subr.mxu0 0.0
        %424 = vmatpush1.msra.mxu0 0.0
        %425 = vmatprep.subr.mxu0 0.0
        %426 = vmatpush1.msra.mxu0 0.0
        %427 = vmatprep.subr.mxu0 0.0
        %428 = vmatpush1.msra.mxu0 0.0
        %429 = vmatprep.subr.mxu0 0.0
        %430 = vmatpush1.msra.mxu0 0.0
        %431 = vmatprep.subr.mxu0 0.0
        %432 = vmatpush1.msra.mxu0 0.0
        %433 = vmatprep.subr.mxu0 0.0
        %434 = vmatpush1.msra.mxu0 0.0
        %435 = vmatprep.subr.mxu0 0.0
        %436 = vmatpush1.msra.mxu0 0.0
        %437 = vmatprep.subr.mxu0 0.0
        %438 = vmatpush1.msra.mxu0 0.0
        %439 = vmatprep.subr.mxu0 0.0
        %440 = vmatpush1.msra.mxu0 0.0
        %441 = vmatprep.subr.mxu0 0.0
        %442 = vmatpush1.msra.mxu0 0.0
        %443 = vmatprep.subr.mxu0 0.0
        %444 = vmatpush1.msra.mxu0 0.0
        %445 = vmatprep.subr.mxu0 0.0
        %446 = vmatpush1.msra.mxu0 0.0
        %447 = vmatprep.subr.mxu0 0.0
        %448 = vmatpush1.msra.mxu0 0.0
        %449 = vmatprep.subr.mxu0 0.0
        %450 = vmatpush1.msra.mxu0 0.0
        %451 = vmatprep.subr.mxu0 0.0
        %452 = vmatpush1.msra.mxu0 0.0
        %453 = vmatprep.subr.mxu0 0.0
        %454 = vmatpush1.msra.mxu0 0.0
        %455 = vmatprep.subr.mxu0 0.0
        %456 = vmatpush1.msra.mxu0 0.0
        %457 = vmatprep.subr.mxu0 0.0
        %458 = vmatpush1.msra.mxu0 0.0
        %459 = vmatprep.subr.mxu0 0.0
        %460 = vmatpush1.msra.mxu0 0.0
        %461 = vmatprep.subr.mxu0 0.0
        %462 = vmatpush1.msra.mxu0 0.0
        %463 = vmatprep.mubr.f32.mxu0 0.0
        %464 = vmatmul.mubr.f32.gmra.mrb[0].mxu0 %v397
        %v465 = vpop.f32.mrb[0].mxu0
        %v466 = vadd.f32 %v393, %v465
        %v467 = vpop.f32.mrb[0].mxu0
        %468 = vdwg.mxu0
        %v469 = vld [vmem:[%s4] sm:$0xff]
        %v470 = vld [vmem:[%s4 + $0x8] sm:$0xff]
        %471 = vmatprep.subr.mxu0 0.0
        %472 = vmatpush1.msra.mxu0 %v469
        %473 = vmatprep.subr.mxu0 0.0
        %474 = vmatpush1.msra.mxu0 %v470
        %475 = vmatprep.subr.mxu0 0.0
        %476 = vmatpush1.msra.mxu0 0.0
        %477 = vmatprep.subr.mxu0 0.0
        %478 = vmatpush1.msra.mxu0 0.0
        %479 = vmatprep.subr.mxu0 0.0
        %480 = vmatpush1.msra.mxu0 0.0
        %481 = vmatprep.subr.mxu0 0.0
        %482 = vmatpush1.msra.mxu0 0.0
        %483 = vmatprep.subr.mxu0 0.0
        %484 = vmatpush1.msra.mxu0 0.0
        %485 = vmatprep.subr.mxu0 0.0
        %486 = vmatpush1.msra.mxu0 0.0
        %487 = vmatprep.subr.mxu0 0.0
        %488 = vmatpush1.msra.mxu0 0.0
        %489 = vmatprep.subr.mxu0 0.0
        %490 = vmatpush1.msra.mxu0 0.0
        %491 = vmatprep.subr.mxu0 0.0
        %492 = vmatpush1.msra.mxu0 0.0
        %493 = vmatprep.subr.mxu0 0.0
        %494 = vmatpush1.msra.mxu0 0.0
        %495 = vmatprep.subr.mxu0 0.0
        %496 = vmatpush1.msra.mxu0 0.0
        %497 = vmatprep.subr.mxu0 0.0
        %498 = vmatpush1.msra.mxu0 0.0
        %499 = vmatprep.subr.mxu0 0.0
        %500 = vmatpush1.msra.mxu0 0.0
        %501 = vmatprep.subr.mxu0 0.0
        %502 = vmatpush1.msra.mxu0 0.0
        %503 = vmatprep.subr.mxu0 0.0
        %504 = vmatpush1.msra.mxu0 0.0
        %505 = vmatprep.subr.mxu0 0.0
        %506 = vmatpush1.msra.mxu0 0.0
        %507 = vmatprep.subr.mxu0 0.0
        %508 = vmatpush1.msra.mxu0 0.0
        %509 = vmatprep.subr.mxu0 0.0
        %510 = vmatpush1.msra.mxu0 0.0
        %511 = vmatprep.subr.mxu0 0.0
        %512 = vmatpush1.msra.mxu0 0.0
        %513 = vmatprep.subr.mxu0 0.0
        %514 = vmatpush1.msra.mxu0 0.0
        %515 = vmatprep.subr.mxu0 0.0
        %516 = vmatpush1.msra.mxu0 0.0
        %517 = vmatprep.subr.mxu0 0.0
        %518 = vmatpush1.msra.mxu0 0.0
        %519 = vmatprep.subr.mxu0 0.0
        %520 = vmatpush1.msra.mxu0 0.0
        %521 = vmatprep.subr.mxu0 0.0
        %522 = vmatpush1.msra.mxu0 0.0
        %523 = vmatprep.subr.mxu0 0.0
        %524 = vmatpush1.msra.mxu0 0.0
        %525 = vmatprep.subr.mxu0 0.0
        %526 = vmatpush1.msra.mxu0 0.0
        %527 = vmatprep.subr.mxu0 0.0
        %528 = vmatpush1.msra.mxu0 0.0
        %529 = vmatprep.subr.mxu0 0.0
        %530 = vmatpush1.msra.mxu0 0.0
        %531 = vmatprep.subr.mxu0 0.0
        %532 = vmatpush1.msra.mxu0 0.0
        %533 = vmatprep.subr.mxu0 0.0
        %534 = vmatpush1.msra.mxu0 0.0
        %535 = vmatprep.mubr.f32.mxu0 0.0
        %536 = vmatmul.mubr.f32.gmra.mrb[0].mxu0 %v397
        %v537 = vpop.f32.mrb[0].mxu0
        %v538 = vadd.f32 0.0, %v537
        %v539 = vpop.f32.mrb[0].mxu0
        %540 = vdwg.mxu0
        %v541 = vld [vmem:[%s3] sm:$0xf]
        %vm542 = vcmask 31744
        %v544 = vsel %vm542, %v378, 0
        %v547 = vsel %vm542, %v379, 0
        %v550 = vsel %vm542, %v380, 0
        %v553 = vsel %vm542, %v381, 0
        %v556 = vsel %vm542, %v382, 0
        %v559 = vsel %vm542, %v383, 0
        %v562 = vsel %vm542, %v384, 0
        %v565 = vsel %vm542, %v385, 0
        %vm567 = vcmask 1043456
        %v569 = vsel %vm567, %v541, 0
        %571 = vmatprep.subr.mxu0 0.0
        %572 = vmatpush1.msra.mxu0 %v569
        %573 = vmatprep.subr.mxu0 0.0
        %574 = vmatpush1.msra.mxu0 0.0
        %575 = vmatprep.subr.mxu0 0.0
        %576 = vmatpush1.msra.mxu0 0.0
        %577 = vmatprep.subr.mxu0 0.0
        %578 = vmatpush1.msra.mxu0 0.0
        %579 = vmatprep.subr.mxu0 0.0
        %580 = vmatpush1.msra.mxu0 0.0
        %581 = vmatprep.subr.mxu0 0.0
        %582 = vmatpush1.msra.mxu0 0.0
        %583 = vmatprep.subr.mxu0 0.0
        %584 = vmatpush1.msra.mxu0 0.0
        %585 = vmatprep.subr.mxu0 0.0
        %586 = vmatpush1.msra.mxu0 0.0
        %587 = vmatprep.subr.mxu0 0.0
        %588 = vmatpush1.msra.mxu0 0.0
        %589 = vmatprep.subr.mxu0 0.0
        %590 = vmatpush1.msra.mxu0 0.0
        %591 = vmatprep.subr.mxu0 0.0
        %592 = vmatpush1.msra.mxu0 0.0
        %593 = vmatprep.subr.mxu0 0.0
        %594 = vmatpush1.msra.mxu0 0.0
        %595 = vmatprep.subr.mxu0 0.0
        %596 = vmatpush1.msra.mxu0 0.0
        %597 = vmatprep.subr.mxu0 0.0
        %598 = vmatpush1.msra.mxu0 0.0
        %599 = vmatprep.subr.mxu0 0.0
        %600 = vmatpush1.msra.mxu0 0.0
        %601 = vmatprep.subr.mxu0 0.0
        %602 = vmatpush1.msra.mxu0 0.0
        %603 = vmatprep.subr.mxu0 0.0
        %604 = vmatpush1.msra.mxu0 0.0
        %605 = vmatprep.subr.mxu0 0.0
        %606 = vmatpush1.msra.mxu0 0.0
        %607 = vmatprep.subr.mxu0 0.0
        %608 = vmatpush1.msra.mxu0 0.0
        %609 = vmatprep.subr.mxu0 0.0
        %610 = vmatpush1.msra.mxu0 0.0
        %611 = vmatprep.subr.mxu0 0.0
        %612 = vmatpush1.msra.mxu0 0.0
        %613 = vmatprep.subr.mxu0 0.0
        %614 = vmatpush1.msra.mxu0 0.0
        %615 = vmatprep.subr.mxu0 0.0
        %616 = vmatpush1.msra.mxu0 0.0
        %617 = vmatprep.subr.mxu0 0.0
        %618 = vmatpush1.msra.mxu0 0.0
        %619 = vmatprep.subr.mxu0 0.0
        %620 = vmatpush1.msra.mxu0 0.0
        %621 = vmatprep.subr.mxu0 0.0
        %622 = vmatpush1.msra.mxu0 0.0
        %623 = vmatprep.subr.mxu0 0.0
        %624 = vmatpush1.msra.mxu0 0.0
        %625 = vmatprep.subr.mxu0 0.0
        %626 = vmatpush1.msra.mxu0 0.0
        %627 = vmatprep.subr.mxu0 0.0
        %628 = vmatpush1.msra.mxu0 0.0
        %629 = vmatprep.subr.mxu0 0.0
        %630 = vmatpush1.msra.mxu0 0.0
        %631 = vmatprep.subr.mxu0 0.0
        %632 = vmatpush1.msra.mxu0 0.0
        %633 = vmatprep.subr.mxu0 0.0
        %634 = vmatpush1.msra.mxu0 0.0
        %635 = vmatprep.mubr.f32.mxu0 0.0
        %636 = vmatmul.mubr.f32.gmra.mrb[0].mxu0 %v544
        %v637 = vpop.f32.mrb[0].mxu0
        %v638 = vadd.f32 0.0, %v637
        %v639 = vpop.f32.mrb[0].mxu0
        %640 = vmatprep.mubr.f32.mxu0 0.0
        %641 = vmatmul.mubr.f32.gmra.mrb[0].mxu0 %v547
        %v642 = vpop.f32.mrb[0].mxu0
        %v643 = vadd.f32 0.0, %v642
        %v644 = vpop.f32.mrb[0].mxu0
        %645 = vmatprep.mubr.f32.mxu0 0.0
        %646 = vmatmul.mubr.f32.gmra.mrb[0].mxu0 %v550
        %v647 = vpop.f32.mrb[0].mxu0
        %v648 = vadd.f32 0.0, %v647
        %v649 = vpop.f32.mrb[0].mxu0
        %650 = vmatprep.mubr.f32.mxu0 0.0
        %651 = vmatmul.mubr.f32.gmra.mrb[0].mxu0 %v553
        %v652 = vpop.f32.mrb[0].mxu0
        %v653 = vadd.f32 0.0, %v652
        %v654 = vpop.f32.mrb[0].mxu0
        %655 = vmatprep.mubr.f32.mxu0 0.0
        %656 = vmatmul.mubr.f32.gmra.mrb[0].mxu0 %v556
        %v657 = vpop.f32.mrb[0].mxu0
        %v658 = vadd.f32 0.0, %v657
        %v659 = vpop.f32.mrb[0].mxu0
        %660 = vmatprep.mubr.f32.mxu0 0.0
        %661 = vmatmul.mubr.f32.gmra.mrb[0].mxu0 %v559
        %v662 = vpop.f32.mrb[0].mxu0
        %v663 = vadd.f32 0.0, %v662
        %v664 = vpop.f32.mrb[0].mxu0
        %665 = vmatprep.mubr.f32.mxu0 0.0
        %666 = vmatmul.mubr.f32.gmra.mrb[0].mxu0 %v562
        %v667 = vpop.f32.mrb[0].mxu0
        %v668 = vadd.f32 0.0, %v667
        %v669 = vpop.f32.mrb[0].mxu0
        %670 = vmatprep.mubr.f32.mxu0 0.0
        %671 = vmatmul.mubr.f32.gmra.mrb[0].mxu0 %v565
        %v672 = vpop.f32.mrb[0].mxu0
        %v673 = vadd.f32 0.0, %v672
        %v674 = vpop.f32.mrb[0].mxu0
        %675 = vdwg.mxu0
        %v677 = vcombine.high %v466, %v466
        %v679 = vunpack.c.l.s4 1966171168
        %v680 = vunpack.c.0.s8 %v679
        %v681 = vlaneseq
        %v682 = vshrl.u32 %v681, 7
        %v683 = vsub.s32 %v680, %v682
        %v684 = vrot.slane %v466, %v683
        %v686 = vunpack.c.l.s4 1966171168
        %v687 = vunpack.c.0.s8 %v686
        %v688 = vlaneseq
        %v689 = vshrl.u32 %v688, 7
        %v690 = vsub.s32 %v687, %v689
        %v691 = vrot.slane %v677, %v690
        %v692 = vcombine.high %v684, %v684
        %v693 = vcombine.high %v691, %v691
        %v695 = vunpack.c.l.s4 1966171168
        %v696 = vunpack.c.0.s8 %v695
        %v697 = vlaneseq
        %v698 = vshrl.u32 %v697, 7
        %v699 = vsub.s32 %v696, %v698
        %v700 = vrot.slane %v684, %v699
        %v702 = vunpack.c.l.s4 1966171168
        %v703 = vunpack.c.0.s8 %v702
        %v704 = vlaneseq
        %v705 = vshrl.u32 %v704, 7
        %v706 = vsub.s32 %v703, %v705
        %v707 = vrot.slane %v691, %v706
        %v709 = vunpack.c.l.s4 1966171168
        %v710 = vunpack.c.0.s8 %v709
        %v711 = vlaneseq
        %v712 = vshrl.u32 %v711, 7
        %v713 = vsub.s32 %v710, %v712
        %v714 = vrot.slane %v692, %v713
        %v716 = vunpack.c.l.s4 1966171168
        %v717 = vunpack.c.0.s8 %v716
        %v718 = vlaneseq
        %v719 = vshrl.u32 %v718, 7
        %v720 = vsub.s32 %v717, %v719
        %v721 = vrot.slane %v693, %v720
        %v722 = vcombine.high %v700, %v700
        %v723 = vcombine.high %v707, %v707
        %v724 = vcombine.high %v714, %v714
        %v725 = vcombine.high %v721, %v721
        %v726 = vlaneseq
        %v727 = vshrl.u32 %v726, 7
        %v728 = vsub.s32 0, %v727
        %v729 = vrot.slane %v700, %v728
        %v730 = vlaneseq
        %v731 = vshrl.u32 %v730, 7
        %v732 = vsub.s32 0, %v731
        %v733 = vrot.slane %v714, %v732
        %v734 = vlaneseq
        %v735 = vshrl.u32 %v734, 7
        %v736 = vsub.s32 0, %v735
        %v737 = vrot.slane %v722, %v736
        %v738 = vlaneseq
        %v739 = vshrl.u32 %v738, 7
        %v740 = vsub.s32 0, %v739
        %v741 = vrot.slane %v724, %v740
        %v742 = vlaneseq
        %v743 = vshrl.u32 %v742, 7
        %v744 = vsub.s32 0, %v743
        %v745 = vrot.slane %v707, %v744
        %v746 = vlaneseq
        %v747 = vshrl.u32 %v746, 7
        %v748 = vsub.s32 0, %v747
        %v749 = vrot.slane %v721, %v748
        %v750 = vlaneseq
        %v751 = vshrl.u32 %v750, 7
        %v752 = vsub.s32 0, %v751
        %v753 = vrot.slane %v723, %v752
        %v754 = vlaneseq
        %v755 = vshrl.u32 %v754, 7
        %v756 = vsub.s32 0, %v755
        %v757 = vrot.slane %v725, %v756
        %v766 = vadd.f32 %v638, %v729
        %v767 = vadd.f32 %v643, %v733
        %v768 = vadd.f32 %v648, %v737
        %v769 = vadd.f32 %v653, %v741
        %v770 = vadd.f32 %v658, %v745
        %v771 = vadd.f32 %v663, %v749
        %v772 = vadd.f32 %v668, %v753
        %v773 = vadd.f32 %v673, %v757
        %v774 = vadd.f32 %v766, %v538
        %v775 = vadd.f32 %v767, %v538
        %v776 = vadd.f32 %v768, %v538
        %v777 = vadd.f32 %v769, %v538
        %v778 = vadd.f32 %v770, %v538
        %v779 = vadd.f32 %v771, %v538
        %v780 = vadd.f32 %v772, %v538
        %v781 = vadd.f32 %v773, %v538
        %v782 = vmax.f32 %v774, 0.0
        %v783 = vmax.f32 %v775, 0.0
        %v784 = vmax.f32 %v776, 0.0
        %v785 = vmax.f32 %v777, 0.0
        %v786 = vmax.f32 %v778, 0.0
        %v787 = vmax.f32 %v779, 0.0
        %v788 = vmax.f32 %v780, 0.0
        %v789 = vmax.f32 %v781, 0.0
        %v790 = vld [vmem:[%s6] sm:$0xff]
        %v791 = vld [vmem:[%s6 + $0x8] sm:$0xff]
        %v792 = vld [vmem:[%s6 + $0x10] sm:$0xff]
        %v793 = vld [vmem:[%s6 + $0x18] sm:$0xff]
        %v794 = vld [vmem:[%s7] sm:$0x1]
        %v796 = vlaneseq
        %v797 = vshrl.u32 %v796, 7
        %v798 = vsub.s32 0, %v797
        %v799 = vrot.slane %v794, %v798
        %vm801 = vcmask 261120
        %v803 = vsel %vm801, %v782, 0
        %v806 = vsel %vm801, %v783, 0
        %v809 = vsel %vm801, %v784, 0
        %v812 = vsel %vm801, %v785, 0
        %v815 = vsel %vm801, %v786, 0
        %v818 = vsel %vm801, %v787, 0
        %v821 = vsel %vm801, %v788, 0
        %v824 = vsel %vm801, %v789, 0
        %826 = vmatprep.subr.mxu0 0.0
        %827 = vmatpush1.msra.mxu0 %v790
        %828 = vmatprep.subr.mxu0 0.0
        %829 = vmatpush1.msra.mxu0 %v791
        %830 = vmatprep.subr.mxu0 0.0
        %831 = vmatpush1.msra.mxu0 %v792
        %832 = vmatprep.subr.mxu0 0.0
        %833 = vmatpush1.msra.mxu0 %v793
        %834 = vmatprep.subr.mxu0 0.0
        %835 = vmatpush1.msra.mxu0 0.0
        %836 = vmatprep.subr.mxu0 0.0
        %837 = vmatpush1.msra.mxu0 0.0
        %838 = vmatprep.subr.mxu0 0.0
        %839 = vmatpush1.msra.mxu0 0.0
        %840 = vmatprep.subr.mxu0 0.0
        %841 = vmatpush1.msra.mxu0 0.0
        %842 = vmatprep.subr.mxu0 0.0
        %843 = vmatpush1.msra.mxu0 0.0
        %844 = vmatprep.subr.mxu0 0.0
        %845 = vmatpush1.msra.mxu0 0.0
        %846 = vmatprep.subr.mxu0 0.0
        %847 = vmatpush1.msra.mxu0 0.0
        %848 = vmatprep.subr.mxu0 0.0
        %849 = vmatpush1.msra.mxu0 0.0
        %850 = vmatprep.subr.mxu0 0.0
        %851 = vmatpush1.msra.mxu0 0.0
        %852 = vmatprep.subr.mxu0 0.0
        %853 = vmatpush1.msra.mxu0 0.0
        %854 = vmatprep.subr.mxu0 0.0
        %855 = vmatpush1.msra.mxu0 0.0
        %856 = vmatprep.subr.mxu0 0.0
        %857 = vmatpush1.msra.mxu0 0.0
        %858 = vmatprep.subr.mxu0 0.0
        %859 = vmatpush1.msra.mxu0 0.0
        %860 = vmatprep.subr.mxu0 0.0
        %861 = vmatpush1.msra.mxu0 0.0
        %862 = vmatprep.subr.mxu0 0.0
        %863 = vmatpush1.msra.mxu0 0.0
        %864 = vmatprep.subr.mxu0 0.0
        %865 = vmatpush1.msra.mxu0 0.0
        %866 = vmatprep.subr.mxu0 0.0
        %867 = vmatpush1.msra.mxu0 0.0
        %868 = vmatprep.subr.mxu0 0.0
        %869 = vmatpush1.msra.mxu0 0.0
        %870 = vmatprep.subr.mxu0 0.0
        %871 = vmatpush1.msra.mxu0 0.0
        %872 = vmatprep.subr.mxu0 0.0
        %873 = vmatpush1.msra.mxu0 0.0
        %874 = vmatprep.subr.mxu0 0.0
        %875 = vmatpush1.msra.mxu0 0.0
        %876 = vmatprep.subr.mxu0 0.0
        %877 = vmatpush1.msra.mxu0 0.0
        %878 = vmatprep.subr.mxu0 0.0
        %879 = vmatpush1.msra.mxu0 0.0
        %880 = vmatprep.subr.mxu0 0.0
        %881 = vmatpush1.msra.mxu0 0.0
        %882 = vmatprep.subr.mxu0 0.0
        %883 = vmatpush1.msra.mxu0 0.0
        %884 = vmatprep.subr.mxu0 0.0
        %885 = vmatpush1.msra.mxu0 0.0
        %886 = vmatprep.subr.mxu0 0.0
        %887 = vmatpush1.msra.mxu0 0.0
        %888 = vmatprep.subr.mxu0 0.0
        %889 = vmatpush1.msra.mxu0 0.0
        %890 = vmatprep.mubr.f32.mxu0 0.0
        %891 = vmatmul.mubr.f32.gmra.mrb[0].mxu0 %v803
        %v892 = vpop.f32.mrb[0].mxu0
        %v893 = vadd.f32 %v799, %v892
        %v894 = vpop.f32.mrb[0].mxu0
        %895 = vmatprep.mubr.f32.mxu0 0.0
        %896 = vmatmul.mubr.f32.gmra.mrb[0].mxu0 %v806
        %v897 = vpop.f32.mrb[0].mxu0
        %v898 = vadd.f32 %v799, %v897
        %v899 = vpop.f32.mrb[0].mxu0
        %900 = vmatprep.mubr.f32.mxu0 0.0
        %901 = vmatmul.mubr.f32.gmra.mrb[0].mxu0 %v809
        %v902 = vpop.f32.mrb[0].mxu0
        %v903 = vadd.f32 %v799, %v902
        %v904 = vpop.f32.mrb[0].mxu0
        %905 = vmatprep.mubr.f32.mxu0 0.0
        %906 = vmatmul.mubr.f32.gmra.mrb[0].mxu0 %v812
        %v907 = vpop.f32.mrb[0].mxu0
        %v908 = vadd.f32 %v799, %v907
        %v909 = vpop.f32.mrb[0].mxu0
        %910 = vmatprep.mubr.f32.mxu0 0.0
        %911 = vmatmul.mubr.f32.gmra.mrb[0].mxu0 %v815
        %v912 = vpop.f32.mrb[0].mxu0
        %v913 = vadd.f32 %v799, %v912
        %v914 = vpop.f32.mrb[0].mxu0
        %915 = vmatprep.mubr.f32.mxu0 0.0
        %916 = vmatmul.mubr.f32.gmra.mrb[0].mxu0 %v818
        %v917 = vpop.f32.mrb[0].mxu0
        %v918 = vadd.f32 %v799, %v917
        %v919 = vpop.f32.mrb[0].mxu0
        %920 = vmatprep.mubr.f32.mxu0 0.0
        %921 = vmatmul.mubr.f32.gmra.mrb[0].mxu0 %v821
        %v922 = vpop.f32.mrb[0].mxu0
        %v923 = vadd.f32 %v799, %v922
        %v924 = vpop.f32.mrb[0].mxu0
        %925 = vmatprep.mubr.f32.mxu0 0.0
        %926 = vmatmul.mubr.f32.gmra.mrb[0].mxu0 %v824
        %v927 = vpop.f32.mrb[0].mxu0
        %v928 = vadd.f32 %v799, %v927
        %v929 = vpop.f32.mrb[0].mxu0
        %930 = vdwg.mxu0
        %v931 = vmax.f32 %v893, 0.0
        %v932 = vmax.f32 %v898, 0.0
        %v933 = vmax.f32 %v903, 0.0
        %v934 = vmax.f32 %v908, 0.0
        %v935 = vmax.f32 %v913, 0.0
        %v936 = vmax.f32 %v918, 0.0
        %v937 = vmax.f32 %v923, 0.0
        %v938 = vmax.f32 %v928, 0.0
        %v939 = vld [vmem:[%s8] sm:$0x1]
        %v941 = vlaneseq
        %v942 = vshrl.u32 %v941, 7
        %v943 = vsub.s32 0, %v942
        %v944 = vrot.slane %v939, %v943
        %v946 = vmul.f32 %v931, %v944
        %v947 = vmul.f32 %v932, %v944
        %v948 = vmul.f32 %v933, %v944
        %v949 = vmul.f32 %v934, %v944
        %v950 = vmul.f32 %v935, %v944
        %v951 = vmul.f32 %v936, %v944
        %v952 = vmul.f32 %v937, %v944
        %v953 = vmul.f32 %v938, %v944
        %v954 = vsel %vm801, %v946, 0.0
        %955 = vadd.xlane.f32.xlu0 %v954
        %v956 = vpop.xlane.xlu0 %955
        %v957 = vsel %vm801, %v947, 0.0
        %958 = vadd.xlane.f32.xlu0 %v957
        %v959 = vpop.xlane.xlu0 %958
        %v960 = vsel %vm801, %v948, 0.0
        %961 = vadd.xlane.f32.xlu0 %v960
        %v962 = vpop.xlane.xlu0 %961
        %v963 = vsel %vm801, %v949, 0.0
        %964 = vadd.xlane.f32.xlu0 %v963
        %v965 = vpop.xlane.xlu0 %964
        %v966 = vsel %vm801, %v950, 0.0
        %967 = vadd.xlane.f32.xlu0 %v966
        %v968 = vpop.xlane.xlu0 %967
        %v969 = vsel %vm801, %v951, 0.0
        %970 = vadd.xlane.f32.xlu0 %v969
        %v971 = vpop.xlane.xlu0 %970
        %v972 = vsel %vm801, %v952, 0.0
        %973 = vadd.xlane.f32.xlu0 %v972
        %v974 = vpop.xlane.xlu0 %973
        %v975 = vsel %vm801, %v953, 0.0
        %976 = vadd.xlane.f32.xlu0 %v975
        %v977 = vpop.xlane.xlu0 %976
        %v978 = vld [vmem:[#allocation2] sm:$0x1]
        %v980 = vlaneseq
        %v981 = vshrl.u32 %v980, 7
        %v982 = vsub.s32 0, %v981
        %v983 = vrot.slane %v978, %v982
        %984 = vset.pattern.permute.xlu0 0
        %985 = vperm.xlu0 %984, %v983
        %v986 = vpop.permute.xlu0 %985
        %v988 = vadd.f32 %v956, %v986
        %v989 = vadd.f32 %v959, %v986
        %v990 = vadd.f32 %v962, %v986
        %v991 = vadd.f32 %v965, %v986
        %v992 = vadd.f32 %v968, %v986
        %v993 = vadd.f32 %v971, %v986
        %v994 = vadd.f32 %v974, %v986
        %v995 = vadd.f32 %v977, %v986
        %v1004 = vlaneseq
        %v1005 = vand.u32 %v1004, 127
        %v1006 = vlaneseq
        %v1007 = vshrl.u32 %v1006, 7
        %v1008 = vsub.s32 %v1005, %v1007
        %v1009 = vrot.slane %v988, %v1008
        %v1010 = vlaneseq
        %v1011 = vshrl.u32 %v1010, 7
        %v1012 = vsub.s32 %v1005, %v1011
        %v1013 = vrot.slane %v989, %v1012
        %v1014 = vlaneseq
        %v1015 = vshrl.u32 %v1014, 7
        %v1016 = vsub.s32 %v1005, %v1015
        %v1017 = vrot.slane %v990, %v1016
        %v1018 = vlaneseq
        %v1019 = vshrl.u32 %v1018, 7
        %v1020 = vsub.s32 %v1005, %v1019
        %v1021 = vrot.slane %v991, %v1020
        %v1022 = vlaneseq
        %v1023 = vshrl.u32 %v1022, 7
        %v1024 = vsub.s32 %v1005, %v1023
        %v1025 = vrot.slane %v992, %v1024
        %v1026 = vlaneseq
        %v1027 = vshrl.u32 %v1026, 7
        %v1028 = vsub.s32 %v1005, %v1027
        %v1029 = vrot.slane %v993, %v1028
        %v1030 = vlaneseq
        %v1031 = vshrl.u32 %v1030, 7
        %v1032 = vsub.s32 %v1005, %v1031
        %v1033 = vrot.slane %v994, %v1032
        %v1034 = vlaneseq
        %v1035 = vshrl.u32 %v1034, 7
        %v1036 = vsub.s32 %v1005, %v1035
        %v1037 = vrot.slane %v995, %v1036
        %vm1038 = vcmask 1041409
        %v1039 = vsel %vm1038, %v1013, %v1009
        %vm1040 = vcmask 1042434
        %v1041 = vsel %vm1040, %v1017, %v1039
        %vm1042 = vcmask 1043459
        %v1043 = vsel %vm1042, %v1021, %v1041
        %vm1044 = vcmask 1044484
        %v1045 = vsel %vm1044, %v1025, %v1043
        %vm1046 = vcmask 1045509
        %v1047 = vsel %vm1046, %v1029, %v1045
        %vm1048 = vcmask 1046534
        %v1049 = vsel %vm1048, %v1033, %v1047
        %vm1050 = vcmask 1047559
        %v1051 = vsel %vm1050, %v1037, %v1049
        %vm1053 = vcmask 64512
        %1054 = vst.msk [vmem:[%s367] sm:$0xff] %vm1053, %v1051
        %s1055 = sand.u32 %s254, 1
        %s1056 = scalar_lea.sflag [#allocation4], %s1055
        %s1057 = sand.u32 %s254, 1
        %s1058 = smul.addr %s1057, 8
        %s1059 = scalar_lea.vmem [#allocation3], %s1058
        // Predicated region
        $region61: #{tpu_custom_call.1} parent=59 // pred_check
          %p1060 = pneg %p264
        $region62: #{tpu_custom_call.1} parent=59 // pred_check_branch
          %1062 = sbr.rel (%p1060) target = $region64
        $region63: #{tpu_custom_call.1} parent=59 // pred_region
          %s1064 = ssub.s32 128, 128
          %1065 = vsyncadd %s1056, %s1064
          %s1066 = smul.addr %s26, 128
          %s1067 = scalar_lea.hbm %s10, %s1066
          %s1069 = sshll.u32 %s1059, 4
          %s1070 = int_to_ptr.vmem [resolvable:$true] %s1069
          %1072 = dma.vmem_to_hbm [thread:$0]  %s1070, 128, %s1067, %s1056
        $region64: #{tpu_custom_call.1} parent=59 // pred_fallthru
          _
      $region60: #{tpu_custom_call.1} parent=5 // pred_fallthru
        _
      %p1073 = scmp.le.s32.totalorder 2, %s21
      // Predicated region
      $region65: #{tpu_custom_call.1} parent=5 // pred_check
        %p1074 = pneg %p1073
      $region66: #{tpu_custom_call.1} parent=5 // pred_check_branch
        %1076 = sbr.rel (%p1074) target = $region68
      $region67: #{tpu_custom_call.1} parent=5 // pred_region
        %s1077 = ssub.s32 %s21, 2
        // Predicated region
        $region69: #{tpu_custom_call.1} parent=67 // pred_check
          %p1078 = pneg %p270
        $region70: #{tpu_custom_call.1} parent=67 // pred_check_branch
          %1080 = sbr.rel (%p1078) target = $region72
        $region71: #{tpu_custom_call.1} parent=67 // pred_region
          %s1081 = sand.u32 %s255, 1
          %s1082 = scalar_lea.sflag [#allocation4], %s1081
          %s1083 = sand.u32 %s255, 1
          %s1084 = smul.addr %s1083, 8
          %s1085 = scalar_lea.vmem [#allocation3], %s1084
          %1086 = dma.done %s1082, 128
        $region72: #{tpu_custom_call.1} parent=67 // pred_fallthru
          _
      $region68: #{tpu_custom_call.1} parent=5 // pred_fallthru
        _
    $region6: #{tpu_custom_call.1} parent=1 // loop_footer
      %s25 = sadd.s32 1, %s21
    $region7: #{tpu_custom_call.1} parent=1 // loop_footer_branch
      %20 = sbr.rel target = $region3
    $region8: #{tpu_custom_call.1} parent=1 // loop_exit
      _
    %1087 = vsyncpa [#allocation4], 1
    %s1088 = scalar_lea.sflag [#allocation4], 1
    %1089 = vsyncpa %s1088, 1

</llo_original>
